<compile_context>
chip_gen: v7x
topology: tpu7x:2x2x1
jax: 0.10.0
libtpu: 0.0.40
codegen_flags: <defaults>
</compile_context>

<pallas_src>
from functools import partial

import jax
import jax.numpy as jnp
import numpy as np
from jax.experimental import pallas as pl
from jax.experimental.pallas import tpu as pltpu

_ROW_ALIGN = 32  # covers (8,128) f32 tiles and (32,128) 1-byte mask tiles


def _round_up(v, m):
    return ((v + m - 1) // m) * m


def _vmem_capacity_bytes():
    try:
        return int(pltpu.get_tpu_info().vmem_capacity_bytes)
    except Exception:
        return 64 * 1024 * 1024  # conservative fallback (v7x per-core VMEM)


def _choose_batch_tiling(B, K, C, x_b, ct_b, mk_b, out_b, block_b, budget):
    """Pick (nb, TB): batch-grid size and rows per batch tile."""
    # Streamed bytes per batch row (double-buffered by the Pallas pipeline):
    # x + c_true + mask + the two outputs.
    row = 2 * (K * x_b + C * (ct_b + mk_b + 2 * out_b))
    # Resident weight/bias blocks (constant index_map -> DMA'd once).
    resident = 2 * (K * C * 4 + C * 4)
    avail = max(budget - resident, row * _ROW_ALIGN)
    max_tb = max(_ROW_ALIGN, (avail // row) // _ROW_ALIGN * _ROW_ALIGN)
    tb_cap = max(_ROW_ALIGN, min(block_b, max_tb))
    if B <= _ROW_ALIGN:
        return 1, B                      # single full-extent block, no padding
    nb = pl.cdiv(B, tb_cap)
    if B >= 2 * _ROW_ALIGN:
        nb = max(nb, 2)                  # keep both TensorCores busy on v7x
    TB = _round_up(pl.cdiv(B, nb), _ROW_ALIGN)
    return nb, TB


def _cbm_kernel(x_ref, w_ref, b_ref, c_true_ref, mask_ref, c_pred_ref, c_int_ref):
    # predict: full-precision linear layer (HBM-bound op, MXU cost is hidden).
    logits = jnp.dot(x_ref[...], w_ref[...], preferred_element_type=jnp.float32)
    logits = logits + b_ref[...]                       # bias broadcast over batch
    # activation (EUP)
    c_pred = jax.nn.sigmoid(logits)
    # intervene: replace selected concepts with ground truth (VPU select);
    # the != 0 compare runs in-kernel so the mask travels in its native dtype.
    c_int = jnp.where(mask_ref[...] != 0, c_true_ref[...].astype(c_pred.dtype), c_pred)
    c_pred_ref[...] = c_pred.astype(c_pred_ref.dtype)
    c_int_ref[...] = c_int.astype(c_int_ref.dtype)


@partial(jax.jit, static_argnames=("block_b",))
def concept_bottleneck_forward(x, w, b, c_true, intervention_mask, block_b=1024):
    """predict + activate + intervene in one batch-tiled Pallas kernel.

    Args:
      x:                 [B, in_features] float
      w:                 [in_features, n_concepts] float
      b:                 [n_concepts] or [1, n_concepts] float
      c_true:            [B, n_concepts] float  (ground-truth concept values)
      intervention_mask: [B, n_concepts]        (nonzero -> use c_true)
      block_b:           upper bound on batch tile rows

    Returns:
      (c_int, {'c_pred': c_pred, 'c_int': c_int})
    """
    B, K = x.shape
    C = w.shape[1]
    b2 = b.reshape(1, C).astype(jnp.float32)
    out_dtype = x.dtype

    # Mosaic handles 1-bit bool refs awkwardly; widen only in that case.
    mask = intervention_mask
    if mask.dtype == jnp.bool_:
        mask = mask.astype(jnp.int8)

    cap = _vmem_capacity_bytes()
    budget = int(0.7 * cap)              # ~45 MiB on v7x, ~90 MiB on v5e/v6e
    nb, TB = _choose_batch_tiling(
        B, K, C,
        x.dtype.itemsize, c_true.dtype.itemsize, mask.dtype.itemsize,
        jnp.dtype(out_dtype).itemsize, block_b, budget)
    Bp = nb * TB

    # Pad the batch axis only when actually required.
    if Bp != B:
        pad = Bp - B
        x_p = jnp.pad(x, ((0, pad), (0, 0)))
        c_true_p = jnp.pad(c_true, ((0, pad), (0, 0)))
        mask_p = jnp.pad(mask, ((0, pad), (0, 0)))
    else:
        x_p, c_true_p, mask_p = x, c_true, mask

    # TODO(synk): for very large K*C (W no longer VMEM-resident) add a K grid
    # axis ("arbitrary") with an f32 accumulator instead of shrinking TB.
    c_pred_p, c_int_p = pl.pallas_call(
        _cbm_kernel,
        out_shape=(
            jax.ShapeDtypeStruct((Bp, C), out_dtype),   # c_pred
            jax.ShapeDtypeStruct((Bp, C), out_dtype),   # c_int
        ),
        grid=(nb,),
        in_specs=[
            pl.BlockSpec((TB, K), lambda i: (i, 0)),    # x: streamed per batch tile
            pl.BlockSpec((K, C), lambda i: (0, 0)),     # W: VMEM-resident (DMA once)
            pl.BlockSpec((1, C), lambda i: (0, 0)),     # b: VMEM-resident
            pl.BlockSpec((TB, C), lambda i: (i, 0)),    # c_true (native dtype)
            pl.BlockSpec((TB, C), lambda i: (i, 0)),    # intervention mask (native dtype)
        ],
        out_specs=(
            pl.BlockSpec((TB, C), lambda i: (i, 0)),
            pl.BlockSpec((TB, C), lambda i: (i, 0)),
        ),
        compiler_params=pltpu.CompilerParams(
            dimension_semantics=("parallel",),          # megacore-shardable batch axis
            vmem_limit_bytes=int(0.85 * cap),           # generation-aware limit
        ),
    )(x_p, w, b2, c_true_p, mask_p)

    if Bp != B:
        c_pred_p = c_pred_p[:B]
        c_int_p = c_int_p[:B]
    # TODO(synk): AnnotatedTensor label metadata (annotate()) has no Pallas/array
    # equivalent; annotate() is identity on values here (labels are pure metadata).
    return c_int_p, {"c_pred": c_pred_p, "c_int": c_int_p}


def _reference_forward(x, w, b, c_true, mask):
    logits = jnp.matmul(x.astype(jnp.float32), w.astype(jnp.float32),
                        precision=jax.lax.Precision.HIGHEST)
    logits = logits + b.reshape(1, -1).astype(jnp.float32)
    c_pred = jax.nn.sigmoid(logits)
    c_int = jnp.where(mask != 0, c_true, c_pred)
    return c_pred, c_int


if __name__ == "__main__":
    key = jax.random.PRNGKey(0)
    k1, k2, k3, k4, k5 = jax.random.split(key, 5)

    # Module config: in_features=32, annotations=[["c0", ..., "c15"]] -> shape [16].
    B, in_features, n_concepts = 8, 32, 16

    x = jax.random.normal(k1, (B, in_features), dtype=jnp.float32)
    bound = 1.0 / np.sqrt(in_features)
    w = jax.random.uniform(k2, (in_features, n_concepts), jnp.float32, -bound, bound)
    b = jax.random.uniform(k3, (1, n_concepts), jnp.float32, -bound, bound)
    c_true = jax.random.uniform(k4, (B, n_concepts), jnp.float32, 0.0, 1.0)
    intervention_mask = (
        jax.random.uniform(k5, (B, n_concepts), jnp.float32) < 0.3
    ).astype(jnp.float32)

    out, val_dict = concept_bottleneck_forward(x, w, b, c_true, intervention_mask)
    out = jax.block_until_ready(out)
    c_pred = np.asarray(val_dict["c_pred"])
    c_int = np.asarray(val_dict["c_int"])

    ref_pred, ref_int = _reference_forward(x, w, b, c_true, intervention_mask)
    np.testing.assert_allclose(c_pred, np.asarray(ref_pred), rtol=5e-3, atol=5e-3)
    np.testing.assert_allclose(c_int, np.asarray(ref_int), rtol=5e-3, atol=5e-3)
    np.testing.assert_array_equal(np.asarray(out), c_int)
    # Intervention must copy ground truth exactly where the mask is set.
    m = np.asarray(intervention_mask) != 0
    np.testing.assert_array_equal(c_int[m], np.asarray(c_true)[m])

    # Second config exercising batch padding, nb >= 2 and a non-128-multiple C.
    B2, K2, C2 = 200, 64, 48
    j1, j2, j3, j4, j5 = jax.random.split(jax.random.PRNGKey(1), 5)
    x2 = jax.random.normal(j1, (B2, K2), dtype=jnp.float32)
    bound2 = 1.0 / np.sqrt(K2)
    w2 = jax.random.uniform(j2, (K2, C2), jnp.float32, -bound2, bound2)
    b2 = jax.random.uniform(j3, (1, C2), jnp.float32, -bound2, bound2)
    c_true2 = jax.random.uniform(j4, (B2, C2), jnp.float32)
    mask2 = (jax.random.uniform(j5, (B2, C2)) < 0.3).astype(jnp.float32)

    out2, vd2 = concept_bottleneck_forward(x2, w2, b2, c_true2, mask2)
    out2 = jax.block_until_ready(out2)
    ref_pred2, ref_int2 = _reference_forward(x2, w2, b2, c_true2, mask2)
    np.testing.assert_allclose(np.asarray(vd2["c_pred"]), np.asarray(ref_pred2),
                               rtol=5e-3, atol=5e-3)
    np.testing.assert_allclose(np.asarray(out2), np.asarray(ref_int2),
                               rtol=5e-3, atol=5e-3)

    print("KERNEL_OK")
</pallas_src>

<mosaic_0001>
module attributes {stable_mosaic.version = 11 : i64} {
  func.func @_cbm_kernel(%arg0: i32, %arg1: memref<8x32xf32, #tpu.memory_space<vmem>>, %arg2: memref<32x16xf32, #tpu.memory_space<vmem>>, %arg3: memref<1x16xf32, #tpu.memory_space<vmem>>, %arg4: memref<8x16xf32, #tpu.memory_space<vmem>>, %arg5: memref<8x16xf32, #tpu.memory_space<vmem>>, %arg6: memref<8x16xf32, #tpu.memory_space<vmem>>, %arg7: memref<8x16xf32, #tpu.memory_space<vmem>>) attributes {dimension_semantics = [#tpu.dimension_semantics<parallel>], iteration_bounds = array<i64: 1>, scalar_prefetch = 0 : i64, scratch_operands = 0 : i64, tpu.core_type = #tpu.core_type<tc>, window_params = [{transform_indices = @transform_0, window_bounds = array<i64: 8, 32>}, {pipeline_mode = #tpu.pipeline_mode<synchronous>, transform_indices = @transform_1, window_bounds = array<i64: 32, 16>}, {pipeline_mode = #tpu.pipeline_mode<synchronous>, transform_indices = @transform_2, window_bounds = array<i64: 1, 16>}, {transform_indices = @transform_3, window_bounds = array<i64: 8, 16>}, {transform_indices = @transform_4, window_bounds = array<i64: 8, 16>}, {transform_indices = @transform_5, window_bounds = array<i64: 8, 16>}, {transform_indices = @transform_6, window_bounds = array<i64: 8, 16>}]} {
    %c0 = arith.constant 0 : index
    %c0_0 = arith.constant 0 : index
    %0 = vector.load %arg1[%c0, %c0_0] : memref<8x32xf32, #tpu.memory_space<vmem>>, vector<8x32xf32>
    %c0_1 = arith.constant 0 : index
    %c0_2 = arith.constant 0 : index
    %1 = vector.load %arg2[%c0_1, %c0_2] : memref<32x16xf32, #tpu.memory_space<vmem>>, vector<32x16xf32>
    %cst = arith.constant dense<0.000000e+00> : vector<8x16xf32>
    %2 = tpu.matmul %0, %1, %cst {dimension_numbers = #tpu.dot_dimension_numbers<[1], [0], [0], [1], [0, 0, 1, 1], [], []>} : vector<8x32xf32>, vector<32x16xf32>, vector<8x16xf32> -> vector<8x16xf32>
    %c0_3 = arith.constant 0 : index
    %c0_4 = arith.constant 0 : index
    %3 = vector.load %arg3[%c0_3, %c0_4] : memref<1x16xf32, #tpu.memory_space<vmem>>, vector<1x16xf32>
    %4 = vector.broadcast %3 : vector<1x16xf32> to vector<8x16xf32>
    %5 = arith.addf %2, %4 : vector<8x16xf32>
    %6 = arith.negf %5 : vector<8x16xf32>
    %7 = math.exp %6 : vector<8x16xf32>
    %cst_5 = arith.constant 1.000000e+00 : f32
    %8 = vector.broadcast %cst_5 : f32 to vector<8x16xf32>
    %9 = arith.addf %8, %7 : vector<8x16xf32>
    %10 = arith.divf %8, %9 : vector<8x16xf32>
    %c0_6 = arith.constant 0 : index
    %c0_7 = arith.constant 0 : index
    %11 = vector.load %arg5[%c0_6, %c0_7] : memref<8x16xf32, #tpu.memory_space<vmem>>, vector<8x16xf32>
    %cst_8 = arith.constant 0.000000e+00 : f32
    %12 = vector.broadcast %cst_8 : f32 to vector<8x16xf32>
    %13 = arith.cmpf one, %11, %12 : vector<8x16xf32>
    %c0_9 = arith.constant 0 : index
    %c0_10 = arith.constant 0 : index
    %14 = vector.load %arg4[%c0_9, %c0_10] : memref<8x16xf32, #tpu.memory_space<vmem>>, vector<8x16xf32>
    %15 = arith.select %13, %14, %10 : vector<8x16xi1>, vector<8x16xf32>
    %c0_11 = arith.constant 0 : index
    %c0_12 = arith.constant 0 : index
    %16 = vector.load %arg6[%c0_11, %c0_12] : memref<8x16xf32, #tpu.memory_space<vmem>>, vector<8x16xf32>
    tpu.vector_store %arg6[%c0_11, %c0_12], %10 {strides = array<i32>} : memref<8x16xf32, #tpu.memory_space<vmem>>, vector<8x16xf32>,
    %c0_13 = arith.constant 0 : index
    %c0_14 = arith.constant 0 : index
    %17 = vector.load %arg7[%c0_13, %c0_14] : memref<8x16xf32, #tpu.memory_space<vmem>>, vector<8x16xf32>
    tpu.vector_store %arg7[%c0_13, %c0_14], %15 {strides = array<i32>} : memref<8x16xf32, #tpu.memory_space<vmem>>, vector<8x16xf32>,
    return
  }
  func.func @transform_0(%arg0: i32) -> (i32, i32) {
    %c0_i32 = arith.constant 0 : i32
    %c0_i32_0 = arith.constant 0 : i32
    return %arg0, %c0_i32 : i32, i32
  }
  func.func @transform_1(%arg0: i32) -> (i32, i32) {
    %c0_i32 = arith.constant 0 : i32
    %c0_i32_0 = arith.constant 0 : i32
    %c0_i32_1 = arith.constant 0 : i32
    return %c0_i32, %c0_i32_0 : i32, i32
  }
  func.func @transform_2(%arg0: i32) -> (i32, i32) {
    %c0_i32 = arith.constant 0 : i32
    %c0_i32_0 = arith.constant 0 : i32
    %c0_i32_1 = arith.constant 0 : i32
    return %c0_i32, %c0_i32_0 : i32, i32
  }
  func.func @transform_3(%arg0: i32) -> (i32, i32) {
    %c0_i32 = arith.constant 0 : i32
    %c0_i32_0 = arith.constant 0 : i32
    return %arg0, %c0_i32 : i32, i32
  }
  func.func @transform_4(%arg0: i32) -> (i32, i32) {
    %c0_i32 = arith.constant 0 : i32
    %c0_i32_0 = arith.constant 0 : i32
    return %arg0, %c0_i32 : i32, i32
  }
  func.func @transform_5(%arg0: i32) -> (i32, i32) {
    %c0_i32 = arith.constant 0 : i32
    %c0_i32_0 = arith.constant 0 : i32
    return %arg0, %c0_i32 : i32, i32
  }
  func.func @transform_6(%arg0: i32) -> (i32, i32) {
    %c0_i32 = arith.constant 0 : i32
    %c0_i32_0 = arith.constant 0 : i32
    return %arg0, %c0_i32 : i32, i32
  }
}

</mosaic_0001>

<llo_original>
// kernel: concept_bottleneck_forward.1
$region0: #{concept_bottleneck_forward.1}
  #allocation0 [shape = 'u32[]', space=smem, size = 0x4, offset = 0x4, fixed_abs, tag = 'smem constant byte address 0x4 - core index']
  #allocation1 [shape = 'u32[144,128]{1,0:T(1,128)}', space=vmem, size = 0x12000, scoped, tag = 'internal scratch']
  %s0 = inlined_call_operand.vmem [shape: f32[8,32], index: 0, kind: input, shape index: {}]
  %s1 = inlined_call_operand.vmem [shape: f32[32,16], index: 1, kind: input, shape index: {}]
  %s2 = inlined_call_operand.vmem [shape: f32[1,16], index: 2, kind: input, shape index: {}]
  %s3 = inlined_call_operand.vmem [shape: f32[8,16], index: 3, kind: input, shape index: {}]
  %s4 = inlined_call_operand.vmem [shape: f32[8,16], index: 4, kind: input, shape index: {}]
  %s5 = inlined_call_operand.hbm [shape: f32[8,16], index: 5, kind: output, shape index: {0}]
  %s6 = inlined_call_operand.vmem [shape: f32[8,16], index: 6, kind: output, shape index: {1}]
  %7 = xla_tuple %s5, %s6
  %s8 = sld [smem:[#allocation0]]
  $region38: #{concept_bottleneck_forward.1} parent=0
    _
  %s10 = ssub.s32 1, %s8
  %s11 = scalar_select 0, %s10, %s8
  $region1: #{concept_bottleneck_forward.1} parent=0
    #allocation2 [shape = 'u8[4096]{0}', space=vmem, size = 0x1000, scoped, tag = 'output window, operand 0, single buffered']
    #allocation3 [shape = 's32[1]{0}', space=sflag, size = 0x4, scoped, tag = 'scoped memory for concept_bottleneck_forward.1']
    %12 = vsyncpa [#allocation3], 0
    // Predicated region
    $region2: #{concept_bottleneck_forward.1} parent=1 // pred_check
      _
    $region3: #{concept_bottleneck_forward.1} parent=1 // pred_check_branch
      %14 = sbr.rel (0) target = $region5
    $region4: #{concept_bottleneck_forward.1} parent=1 // pred_region
      _
    $region5: #{concept_bottleneck_forward.1} parent=1 // pred_fallthru
      _
    // Predicated region
    $region6: #{concept_bottleneck_forward.1} parent=1 // pred_check
      _
    $region7: #{concept_bottleneck_forward.1} parent=1 // pred_check_branch
      %16 = sbr.rel (0) target = $region9
    $region8: #{concept_bottleneck_forward.1} parent=1 // pred_region
      _
    $region9: #{concept_bottleneck_forward.1} parent=1 // pred_fallthru
      _
    // Predicated region
    $region10: #{concept_bottleneck_forward.1} parent=1 // pred_check
      _
    $region11: #{concept_bottleneck_forward.1} parent=1 // pred_check_branch
      %18 = sbr.rel (0) target = $region13
    $region12: #{concept_bottleneck_forward.1} parent=1 // pred_region
      _
    $region13: #{concept_bottleneck_forward.1} parent=1 // pred_fallthru
      _
    // Predicated region
    $region14: #{concept_bottleneck_forward.1} parent=1 // pred_check
      _
    $region15: #{concept_bottleneck_forward.1} parent=1 // pred_check_branch
      %20 = sbr.rel (0) target = $region17
    $region16: #{concept_bottleneck_forward.1} parent=1 // pred_region
      _
    $region17: #{concept_bottleneck_forward.1} parent=1 // pred_fallthru
      _
    // Predicated region
    $region18: #{concept_bottleneck_forward.1} parent=1 // pred_check
      _
    $region19: #{concept_bottleneck_forward.1} parent=1 // pred_check_branch
      %22 = sbr.rel (0) target = $region21
    $region20: #{concept_bottleneck_forward.1} parent=1 // pred_region
      _
    $region21: #{concept_bottleneck_forward.1} parent=1 // pred_fallthru
      _
    %v23 = vld [vmem:[%s0] sm:$0xff]
    %v24 = vld [vmem:[%s1] sm:$0xff]
    %v25 = vld [vmem:[%s1 + $0x8] sm:$0xff]
    %v26 = vld [vmem:[%s1 + $0x10] sm:$0xff]
    %v27 = vld [vmem:[%s1 + $0x18] sm:$0xff]
    %v28 = vld [vmem:[%s2] sm:$0x1]
    %v30 = vlaneseq
    %v31 = vshrl.u32 %v30, 7
    %v32 = vsub.s32 0, %v31
    %v33 = vrot.slane %v28, %v32
    %vm35 = vcmask 261120
    %v37 = vsel %vm35, %v23, 0
    %39 = vmatprep.subr.mxu0 0.0
    %40 = vmatpush1.msra.mxu0 %v24
    %41 = vmatprep.subr.mxu0 0.0
    %42 = vmatpush1.msra.mxu0 %v25
    %43 = vmatprep.subr.mxu0 0.0
    %44 = vmatpush1.msra.mxu0 %v26
    %45 = vmatprep.subr.mxu0 0.0
    %46 = vmatpush1.msra.mxu0 %v27
    %47 = vmatprep.subr.mxu0 0.0
    %48 = vmatpush1.msra.mxu0 0.0
    %49 = vmatprep.subr.mxu0 0.0
    %50 = vmatpush1.msra.mxu0 0.0
    %51 = vmatprep.subr.mxu0 0.0
    %52 = vmatpush1.msra.mxu0 0.0
    %53 = vmatprep.subr.mxu0 0.0
    %54 = vmatpush1.msra.mxu0 0.0
    %55 = vmatprep.subr.mxu0 0.0
    %56 = vmatpush1.msra.mxu0 0.0
    %57 = vmatprep.subr.mxu0 0.0
    %58 = vmatpush1.msra.mxu0 0.0
    %59 = vmatprep.subr.mxu0 0.0
    %60 = vmatpush1.msra.mxu0 0.0
    %61 = vmatprep.subr.mxu0 0.0
    %62 = vmatpush1.msra.mxu0 0.0
    %63 = vmatprep.subr.mxu0 0.0
    %64 = vmatpush1.msra.mxu0 0.0
    %65 = vmatprep.subr.mxu0 0.0
    %66 = vmatpush1.msra.mxu0 0.0
    %67 = vmatprep.subr.mxu0 0.0
    %68 = vmatpush1.msra.mxu0 0.0
    %69 = vmatprep.subr.mxu0 0.0
    %70 = vmatpush1.msra.mxu0 0.0
    %71 = vmatprep.subr.mxu0 0.0
    %72 = vmatpush1.msra.mxu0 0.0
    %73 = vmatprep.subr.mxu0 0.0
    %74 = vmatpush1.msra.mxu0 0.0
    %75 = vmatprep.subr.mxu0 0.0
    %76 = vmatpush1.msra.mxu0 0.0
    %77 = vmatprep.subr.mxu0 0.0
    %78 = vmatpush1.msra.mxu0 0.0
    %79 = vmatprep.subr.mxu0 0.0
    %80 = vmatpush1.msra.mxu0 0.0
    %81 = vmatprep.subr.mxu0 0.0
    %82 = vmatpush1.msra.mxu0 0.0
    %83 = vmatprep.subr.mxu0 0.0
    %84 = vmatpush1.msra.mxu0 0.0
    %85 = vmatprep.subr.mxu0 0.0
    %86 = vmatpush1.msra.mxu0 0.0
    %87 = vmatprep.subr.mxu0 0.0
    %88 = vmatpush1.msra.mxu0 0.0
    %89 = vmatprep.subr.mxu0 0.0
    %90 = vmatpush1.msra.mxu0 0.0
    %91 = vmatprep.subr.mxu0 0.0
    %92 = vmatpush1.msra.mxu0 0.0
    %93 = vmatprep.subr.mxu0 0.0
    %94 = vmatpush1.msra.mxu0 0.0
    %95 = vmatprep.subr.mxu0 0.0
    %96 = vmatpush1.msra.mxu0 0.0
    %97 = vmatprep.subr.mxu0 0.0
    %98 = vmatpush1.msra.mxu0 0.0
    %99 = vmatprep.subr.mxu0 0.0
    %100 = vmatpush1.msra.mxu0 0.0
    %101 = vmatprep.subr.mxu0 0.0
    %102 = vmatpush1.msra.mxu0 0.0
    %103 = vmatprep.mubr.f32.mxu0 0.0
    %104 = vmatmul.mubr.f32.gmra.mrb[0].mxu0 %v37
    %v105 = vpop.f32.mrb[0].mxu0
    %v106 = vadd.f32 %v33, %v105
    %v107 = vpop.f32.mrb[0].mxu0
    %108 = vdwg.mxu0
    %v109 = vxor.u32 %v106, 2147483648
    %v110 = vmul.f32 %v109, 1.442695
    %v111 = vpow.pop %v110
    %v112 = vadd.f32 %v111, 1.0
    %v113 = vrcp.pop %v112
    %v114 = vmul.f32 1.0, %v113
    %v115 = vld [vmem:[%s4] sm:$0xff]
    %vm116 = vcmp.ne.f32.partialorder %v115, 0.0
    %v117 = vld [vmem:[%s3] sm:$0xff]
    %v118 = vsel %vm116, %v117, %v114
    %vm119 = vcmask 130048
    %120 = vst.msk [vmem:[#allocation2] sm:$0xff] %vm119, %v114
    %121 = vst.msk [vmem:[%s6] sm:$0xff] %vm119, %v118
    // Predicated region
    $region22: #{concept_bottleneck_forward.1} parent=1 // pred_check
      _
    $region23: #{concept_bottleneck_forward.1} parent=1 // pred_check_branch
      %123 = sbr.rel (0) target = $region25
    $region24: #{concept_bottleneck_forward.1} parent=1 // pred_region
      %s125 = ssub.s32 128, 128
      %126 = vsyncadd [#allocation3], %s125
      %s128 = sshll.u32 [#allocation2], 4
      %s129 = int_to_ptr.vmem [resolvable:$true] %s128
      %131 = dma.vmem_to_hbm [thread:$0]  %s129, 128, %s5, [#allocation3]
    $region25: #{concept_bottleneck_forward.1} parent=1 // pred_fallthru
      _
    // Predicated region
    $region26: #{concept_bottleneck_forward.1} parent=1 // pred_check
      _
    $region27: #{concept_bottleneck_forward.1} parent=1 // pred_check_branch
      %133 = sbr.rel (0) target = $region29
    $region28: #{concept_bottleneck_forward.1} parent=1 // pred_region
      _
    $region29: #{concept_bottleneck_forward.1} parent=1 // pred_fallthru
      _
    // Predicated region
    $region30: #{concept_bottleneck_forward.1} parent=1 // pred_check
      _
    $region31: #{concept_bottleneck_forward.1} parent=1 // pred_check_branch
      %135 = sbr.rel (0) target = $region33
    $region32: #{concept_bottleneck_forward.1} parent=1 // pred_region
      %136 = dma.done [#allocation3], 128
    $region33: #{concept_bottleneck_forward.1} parent=1 // pred_fallthru
      _
    // Predicated region
    $region34: #{concept_bottleneck_forward.1} parent=1 // pred_check
      _
    $region35: #{concept_bottleneck_forward.1} parent=1 // pred_check_branch
      %138 = sbr.rel (0) target = $region37
    $region36: #{concept_bottleneck_forward.1} parent=1 // pred_region
      _
    $region37: #{concept_bottleneck_forward.1} parent=1 // pred_fallthru
      _
    %139 = vsyncpa [#allocation3], 1

</llo_original>
